<compile_context>
chip_gen: v6e
topology: v6e:2x2x1
jax: 0.10.0
libtpu: 0.0.40
codegen_flags: <defaults>
</compile_context>

<pallas_src>
import functools

import jax
import jax.numpy as jnp
from jax import lax
from jax.experimental import pallas as pl
from jax.experimental.pallas import tpu as pltpu

LANES = 128
MAX_BLOCK_ROWS = 2048  # (2048, 128) f32 tile = 1 MiB; 3 inputs x 2 bufs = 6 MiB VMEM


def _round_up(x, m):
    return ((x + m - 1) // m) * m


def _bce_with_logits(x, y):
    # Numerically stable: max(x,0) - x*y + log1p(exp(-|x|))  (matches PyTorch)
    return jnp.maximum(x, 0.0) - x * y + jnp.log1p(jnp.exp(-jnp.abs(x)))


def _make_kernel(block_rows, n_valid, n_padded, blocks_per_part):
    """Build the kernel, statically specialized on whether a padded tail exists."""
    needs_mask = n_padded != n_valid

    def _partial_sum(per_elem):
        # (block_rows, 128) -> (block_rows//8, 8, 128) -> (8, 128) via VPU adds.
        return jnp.sum(per_elem.reshape(block_rows // 8, 8, LANES), axis=0)

    def kernel(ol_ref, sd_ref, gt_ref, out_ref):
        i = pl.program_id(1)

        @pl.when(i == 0)
        def _():
            out_ref[...] = jnp.zeros_like(out_ref)

        ol = ol_ref[...].astype(jnp.float32)
        sd = sd_ref[...].astype(jnp.float32)
        y = gt_ref[...].astype(jnp.float32)
        per_elem = _bce_with_logits(ol, y) + _bce_with_logits(sd, y)

        if needs_mask:
            blk = pl.program_id(0) * blocks_per_part + i
            last_blk = pl.num_programs(0) * blocks_per_part - 1

            @pl.when(blk != last_blk)
            def _():
                out_ref[...] += _partial_sum(per_elem)

            @pl.when(blk == last_blk)
            def _():
                base = blk * (block_rows * LANES)
                r = lax.broadcasted_iota(jnp.int32, per_elem.shape, 0)
                c = lax.broadcasted_iota(jnp.int32, per_elem.shape, 1)
                gidx = base + r * LANES + c
                masked = jnp.where(gidx < n_valid, per_elem, 0.0)
                out_ref[...] += _partial_sum(masked)
        else:
            out_ref[...] += _partial_sum(per_elem)

    return kernel


@functools.partial(jax.jit, static_argnames=("reduction",))
def bce_loss(ol_output, sd_output, gt_s, reduction="sum"):
    assert ol_output.shape == sd_output.shape == gt_s.shape
    n = 1
    for d in ol_output.shape:
        n *= d
    assert n > 0

    # Block sizing: multiple of 8 rows, capped for VMEM, shrunk for tiny inputs.
    rows_needed = pl.cdiv(n, LANES)
    block_rows = max(8, min(MAX_BLOCK_ROWS, _round_up(rows_needed, 8)))
    chunk = block_rows * LANES
    num_blocks = pl.cdiv(n, chunk)
    padded_n = num_blocks * chunk
    padded_rows = padded_n // LANES

    def to_slab(x):
        flat = x.reshape(-1)  # contiguous flatten: free reshape, native dtype
        if padded_n != n:
            flat = jnp.pad(flat, (0, padded_n - n))  # only for ragged tails
        return flat.reshape(padded_rows, LANES)

    ol2 = to_slab(ol_output)
    sd2 = to_slab(sd_output)
    gt2 = to_slab(gt_s)

    # v7x megacore: split the block loop across 2 TensorCores when possible.
    num_parts = 2 if (num_blocks % 2 == 0 and num_blocks >= 2) else 1
    blocks_per_part = num_blocks // num_parts

    kernel = _make_kernel(block_rows, n, padded_n, blocks_per_part)

    tile_spec = pl.BlockSpec(
        (block_rows, LANES), lambda p, i: (p * blocks_per_part + i, 0)
    )

    partials = pl.pallas_call(
        kernel,
        out_shape=jax.ShapeDtypeStruct((num_parts, 8, LANES), jnp.float32),
        grid_spec=pltpu.PrefetchScalarGridSpec(
            num_scalar_prefetch=0,
            grid=(num_parts, blocks_per_part),
            in_specs=[tile_spec, tile_spec, tile_spec],
            out_specs=pl.BlockSpec((None, 8, LANES), lambda p, i: (p, 0, 0)),
        ),
        compiler_params=pltpu.CompilerParams(
            dimension_semantics=("parallel", "arbitrary"),
            vmem_limit_bytes=32 * 1024 * 1024,
        ),
    )(ol2, sd2, gt2)

    total = jnp.sum(partials)  # final cross-lane reduce of <= 2 KiB in XLA
    if reduction == "mean":
        # torch.mean(ol_bce + sd_bce): divide the two-term sum by n elements.
        return total / jnp.float32(n)
    elif reduction == "sum":
        return total
    else:
        raise ValueError(f"unsupported reduction: {reduction}")


def _ref_loss(ol, sd, gt, reduction):
    per = _bce_with_logits(ol.astype(jnp.float32), gt.astype(jnp.float32)) + \
          _bce_with_logits(sd.astype(jnp.float32), gt.astype(jnp.float32))
    return jnp.mean(per) if reduction == "mean" else jnp.sum(per)


if __name__ == "__main__":
    key = jax.random.PRNGKey(0)
    k1, k2, k3, k4, k5, k6 = jax.random.split(key, 6)

    # NCHW-like shapes: batch=2, channels=4, spatial=16x16 (divisible case)
    shape = (2, 4, 16, 16)
    ol_output = jax.random.normal(k1, shape, dtype=jnp.float32)
    sd_output = jax.random.normal(k2, shape, dtype=jnp.float32)
    gt_s = (jax.random.uniform(k3, shape) > 0.5).astype(jnp.float32)

    loss_sum = bce_loss(ol_output, sd_output, gt_s, reduction="sum")
    jax.block_until_ready(loss_sum)
    assert jnp.allclose(loss_sum, _ref_loss(ol_output, sd_output, gt_s, "sum"),
                        rtol=1e-5, atol=1e-5)

    loss_mean = bce_loss(ol_output, sd_output, gt_s, reduction="mean")
    jax.block_until_ready(loss_mean)
    assert jnp.allclose(loss_mean, _ref_loss(ol_output, sd_output, gt_s, "mean"),
                        rtol=1e-5, atol=1e-5)

    # Ragged shape exercising the in-kernel last-block mask path.
    rshape = (2, 3, 7, 5)
    ol_r = jax.random.normal(k4, rshape, dtype=jnp.float32)
    sd_r = jax.random.normal(k5, rshape, dtype=jnp.float32)
    gt_r = (jax.random.uniform(k6, rshape) > 0.5).astype(jnp.float32)
    loss_r = bce_loss(ol_r, sd_r, gt_r, reduction="sum")
    jax.block_until_ready(loss_r)
    assert jnp.allclose(loss_r, _ref_loss(ol_r, sd_r, gt_r, "sum"),
                        rtol=1e-5, atol=1e-5)

    print("KERNEL_OK")
</pallas_src>

<mosaic_0001>
module attributes {stable_mosaic.version = 11 : i64} {
  func.func @kernel(%arg0: i32, %arg1: i32, %arg2: memref<16x128xf32, #tpu.memory_space<vmem>>, %arg3: memref<16x128xf32, #tpu.memory_space<vmem>>, %arg4: memref<16x128xf32, #tpu.memory_space<vmem>>, %arg5: memref<1x8x128xf32, #tpu.memory_space<vmem>>) attributes {dimension_semantics = [#tpu.dimension_semantics<parallel>, #tpu.dimension_semantics<arbitrary>], iteration_bounds = array<i64: 1, 1>, scalar_prefetch = 0 : i64, scratch_operands = 0 : i64, tpu.core_type = #tpu.core_type<tc>, window_params = [{transform_indices = @transform_0, window_bounds = array<i64: 16, 128>}, {transform_indices = @transform_1, window_bounds = array<i64: 16, 128>}, {transform_indices = @transform_2, window_bounds = array<i64: 16, 128>}, {transform_indices = @transform_3, window_bounds = array<i64: 1, 8, 128>}]} {
    %c0_i32 = arith.constant 0 : i32
    %0 = arith.cmpi eq, %arg1, %c0_i32 : i32
    %1 = arith.extui %0 : i1 to i32
    %c0_i32_0 = arith.constant 0 : i32
    %2 = arith.cmpi ne, %1, %c0_i32_0 : i32
    scf.if %2 {
      %cst_16 = arith.constant 0.000000e+00 : f32
      %35 = vector.broadcast %cst_16 : f32 to vector<8x128xf32>
      %c0_17 = arith.constant 0 : index
      %c0_18 = arith.constant 0 : index
      %c0_19 = arith.constant 0 : index
      %36 = vector.load %arg5[%c0_17, %c0_18, %c0_19] : memref<1x8x128xf32, #tpu.memory_space<vmem>>, vector<1x8x128xf32>
      %37 = vector.shape_cast %36 : vector<1x8x128xf32> to vector<8x128xf32>
      %38 = vector.shape_cast %35 : vector<8x128xf32> to vector<1x8x128xf32>
      tpu.vector_store %arg5[%c0_17, %c0_18, %c0_19], %38 {strides = array<i32>} : memref<1x8x128xf32, #tpu.memory_space<vmem>>, vector<1x8x128xf32>,
    } else {
    }
    %c0 = arith.constant 0 : index
    %c0_1 = arith.constant 0 : index
    %3 = vector.load %arg2[%c0, %c0_1] : memref<16x128xf32, #tpu.memory_space<vmem>>, vector<16x128xf32>
    %c0_2 = arith.constant 0 : index
    %c0_3 = arith.constant 0 : index
    %4 = vector.load %arg3[%c0_2, %c0_3] : memref<16x128xf32, #tpu.memory_space<vmem>>, vector<16x128xf32>
    %c0_4 = arith.constant 0 : index
    %c0_5 = arith.constant 0 : index
    %5 = vector.load %arg4[%c0_4, %c0_5] : memref<16x128xf32, #tpu.memory_space<vmem>>, vector<16x128xf32>
    %cst = arith.constant 0.000000e+00 : f32
    %6 = vector.broadcast %cst : f32 to vector<16x128xf32>
    %7 = arith.maximumf %3, %6 : vector<16x128xf32>
    %8 = arith.mulf %3, %5 : vector<16x128xf32>
    %9 = arith.subf %7, %8 : vector<16x128xf32>
    %10 = math.absf %3 : vector<16x128xf32>
    %cst_6 = arith.constant 0.000000e+00 : f32
    %11 = vector.broadcast %cst_6 : f32 to vector<16x128xf32>
    %12 = arith.subf %11, %10 : vector<16x128xf32>
    %13 = math.exp %12 : vector<16x128xf32>
    %14 = math.log1p %13 : vector<16x128xf32>
    %15 = arith.addf %9, %14 : vector<16x128xf32>
    %cst_7 = arith.constant 0.000000e+00 : f32
    %16 = vector.broadcast %cst_7 : f32 to vector<16x128xf32>
    %17 = arith.maximumf %4, %16 : vector<16x128xf32>
    %18 = arith.mulf %4, %5 : vector<16x128xf32>
    %19 = arith.subf %17, %18 : vector<16x128xf32>
    %20 = math.absf %4 : vector<16x128xf32>
    %cst_8 = arith.constant 0.000000e+00 : f32
    %21 = vector.broadcast %cst_8 : f32 to vector<16x128xf32>
    %22 = arith.subf %21, %20 : vector<16x128xf32>
    %23 = math.exp %22 : vector<16x128xf32>
    %24 = math.log1p %23 : vector<16x128xf32>
    %25 = arith.addf %19, %24 : vector<16x128xf32>
    %26 = arith.addf %15, %25 : vector<16x128xf32>
    %c0_9 = arith.constant 0 : index
    %c0_10 = arith.constant 0 : index
    %c0_11 = arith.constant 0 : index
    %27 = vector.load %arg5[%c0_9, %c0_10, %c0_11] : memref<1x8x128xf32, #tpu.memory_space<vmem>>, vector<1x8x128xf32>
    %28 = vector.shape_cast %27 : vector<1x8x128xf32> to vector<8x128xf32>
    %29 = vector.shape_cast %26 : vector<16x128xf32> to vector<2x8x128xf32>
    %cst_12 = arith.constant dense<0.000000e+00> : vector<8x128xf32>
    %30 = vector.multi_reduction <add>, %29, %cst_12 [0] : vector<2x8x128xf32> to vector<8x128xf32>
    %31 = arith.addf %28, %30 : vector<8x128xf32>
    %c0_13 = arith.constant 0 : index
    %c0_14 = arith.constant 0 : index
    %c0_15 = arith.constant 0 : index
    %32 = vector.load %arg5[%c0_13, %c0_14, %c0_15] : memref<1x8x128xf32, #tpu.memory_space<vmem>>, vector<1x8x128xf32>
    %33 = vector.shape_cast %32 : vector<1x8x128xf32> to vector<8x128xf32>
    %34 = vector.shape_cast %31 : vector<8x128xf32> to vector<1x8x128xf32>
    tpu.vector_store %arg5[%c0_13, %c0_14, %c0_15], %34 {strides = array<i32>} : memref<1x8x128xf32, #tpu.memory_space<vmem>>, vector<1x8x128xf32>,
    return
  }
  func.func @transform_0(%arg0: i32, %arg1: i32) -> (i32, i32) {
    %c1_i32 = arith.constant 1 : i32
    %0 = arith.muli %arg0, %c1_i32 : i32
    %1 = arith.addi %0, %arg1 : i32
    %c0_i32 = arith.constant 0 : i32
    %c0_i32_0 = arith.constant 0 : i32
    return %1, %c0_i32 : i32, i32
  }
  func.func @transform_1(%arg0: i32, %arg1: i32) -> (i32, i32) {
    %c1_i32 = arith.constant 1 : i32
    %0 = arith.muli %arg0, %c1_i32 : i32
    %1 = arith.addi %0, %arg1 : i32
    %c0_i32 = arith.constant 0 : i32
    %c0_i32_0 = arith.constant 0 : i32
    return %1, %c0_i32 : i32, i32
  }
  func.func @transform_2(%arg0: i32, %arg1: i32) -> (i32, i32) {
    %c1_i32 = arith.constant 1 : i32
    %0 = arith.muli %arg0, %c1_i32 : i32
    %1 = arith.addi %0, %arg1 : i32
    %c0_i32 = arith.constant 0 : i32
    %c0_i32_0 = arith.constant 0 : i32
    return %1, %c0_i32 : i32, i32
  }
  func.func @transform_3(%arg0: i32, %arg1: i32) -> (i32, i32, i32) {
    %c0_i32 = arith.constant 0 : i32
    %c0_i32_0 = arith.constant 0 : i32
    %c0_i32_1 = arith.constant 0 : i32
    return %arg0, %c0_i32, %c0_i32_0 : i32, i32, i32
  }
}

</mosaic_0001>

<llo_original>
// kernel: bce_loss.1
$region0: #{bce_loss.1}
  #allocation0 [shape = 'u32[]', space=smem, size = 0x4, offset = 0x4, fixed_abs, tag = 'smem constant byte address 0x4 - core index']
  #allocation1 [shape = 'u32[144,128]{1,0:T(1,128)}', space=vmem, size = 0x12000, scoped, tag = 'internal scratch']
  %s0 = inlined_call_operand.vmem [shape: f32[16,128], index: 0, kind: input, shape index: {}]
  %s1 = inlined_call_operand.vmem [shape: f32[16,128], index: 1, kind: input, shape index: {}]
  %s2 = inlined_call_operand.vmem [shape: f32[16,128], index: 2, kind: input, shape index: {}]
  %s3 = inlined_call_operand.vmem [shape: f32[1,8,128], index: 3, kind: output, shape index: {}]
  %s4 = sld [smem:[#allocation0]]
  $region26: #{bce_loss.1} parent=0
    _
  %s6 = ssub.s32 1, %s4
  %s7 = scalar_select 0, %s6, %s4
  // Predicated region
  $region2: #{bce_loss.1} parent=0 // pred_check
    _
  $region3: #{bce_loss.1} parent=0 // pred_check_branch
    %9 = sbr.rel (0) target = $region5
  $region4: #{bce_loss.1} parent=0 // pred_region
    %s10 = sadd.s32 0, 0
    %s11 = smul.u32 2, %s10
    %p12 = scmp.lt.s32.totalorder %s11, 1
    %s13 = scalar_select %p12, %s11, 1
    %s14 = smul.addr %s13, 8
    %s15 = scalar_lea.vmem %s0, %s14
    %s16 = sadd.s32 0, 0
    %s17 = smul.u32 2, %s16
  $region5: #{bce_loss.1} parent=0 // pred_fallthru
    _
  // Predicated region
  $region6: #{bce_loss.1} parent=0 // pred_check
    _
  $region7: #{bce_loss.1} parent=0 // pred_check_branch
    %19 = sbr.rel (0) target = $region9
  $region8: #{bce_loss.1} parent=0 // pred_region
    %s20 = sadd.s32 0, 0
    %s21 = smul.u32 2, %s20
    %p22 = scmp.lt.s32.totalorder %s21, 1
    %s23 = scalar_select %p22, %s21, 1
    %s24 = smul.addr %s23, 8
    %s25 = scalar_lea.vmem %s1, %s24
    %s26 = sadd.s32 0, 0
    %s27 = smul.u32 2, %s26
  $region9: #{bce_loss.1} parent=0 // pred_fallthru
    _
  // Predicated region
  $region10: #{bce_loss.1} parent=0 // pred_check
    _
  $region11: #{bce_loss.1} parent=0 // pred_check_branch
    %29 = sbr.rel (0) target = $region13
  $region12: #{bce_loss.1} parent=0 // pred_region
    %s30 = sadd.s32 0, 0
    %s31 = smul.u32 2, %s30
    %p32 = scmp.lt.s32.totalorder %s31, 1
    %s33 = scalar_select %p32, %s31, 1
    %s34 = smul.addr %s33, 8
    %s35 = scalar_lea.vmem %s2, %s34
    %s36 = sadd.s32 0, 0
    %s37 = smul.u32 2, %s36
  $region13: #{bce_loss.1} parent=0 // pred_fallthru
    _
  %s38 = sadd.s32 0, 0
  %s39 = smul.u32 2, %s38
  %p40 = scmp.lt.s32.totalorder %s39, 1
  %s41 = scalar_select %p40, %s39, 1
  %s42 = smul.addr %s41, 8
  %s43 = scalar_lea.vmem %s0, %s42
  %s44 = sadd.s32 0, 0
  %s45 = smul.u32 2, %s44
  %p46 = scmp.lt.s32.totalorder %s45, 1
  %s47 = scalar_select %p46, %s45, 1
  %s48 = smul.addr %s47, 8
  %s49 = scalar_lea.vmem %s1, %s48
  %s50 = sadd.s32 0, 0
  %s51 = smul.u32 2, %s50
  %p52 = scmp.lt.s32.totalorder %s51, 1
  %s53 = scalar_select %p52, %s51, 1
  %s54 = smul.addr %s53, 8
  %s55 = scalar_lea.vmem %s2, %s54
  %s56 = sadd.s32 0, 0
  %s57 = smul.u32 2, %s56
  %p58 = scmp.lt.s32.totalorder %s57, 1
  %s59 = scalar_select %p58, %s57, 1
  %s60 = smul.addr %s59, 8
  %s61 = scalar_lea.vmem %s0, %s60
  %s62 = sadd.s32 0, 0
  %s63 = smul.u32 2, %s62
  %s64 = sadd.s32 0, 0
  %s65 = smul.u32 2, %s64
  %p66 = scmp.lt.s32.totalorder %s65, 1
  %s67 = scalar_select %p66, %s65, 1
  %s68 = smul.addr %s67, 8
  %s69 = scalar_lea.vmem %s1, %s68
  %s70 = sadd.s32 0, 0
  %s71 = smul.u32 2, %s70
  %s72 = sadd.s32 0, 0
  %s73 = smul.u32 2, %s72
  %p74 = scmp.lt.s32.totalorder %s73, 1
  %s75 = scalar_select %p74, %s73, 1
  %s76 = smul.addr %s75, 8
  %s77 = scalar_lea.vmem %s2, %s76
  %s78 = sadd.s32 0, 0
  %s79 = smul.u32 2, %s78
  %p80 = scmp.eq.s32.totalorder 0, 0
  // Predicated region
  $region14: #{bce_loss.1} parent=0 // pred_check
    %p81 = pneg %p80
  $region15: #{bce_loss.1} parent=0 // pred_check_branch
    %83 = sbr.rel (%p81) target = $region17
  $region16: #{bce_loss.1} parent=0 // pred_region
    %84 = vst [vmem:[%s3] sm:$0xff] 0.0
  $region17: #{bce_loss.1} parent=0 // pred_fallthru
    _
  %v85 = vld [vmem:[%s61] sm:$0xff]
  %v86 = vld [vmem:[%s61 + $0x8] sm:$0xff]
  %v87 = vld [vmem:[%s69] sm:$0xff]
  %v88 = vld [vmem:[%s69 + $0x8] sm:$0xff]
  %v89 = vld [vmem:[%s77] sm:$0xff]
  %v90 = vld [vmem:[%s77 + $0x8] sm:$0xff]
  %v91 = vmax.f32 %v85, 0.0
  %v92 = vmax.f32 %v86, 0.0
  %v93 = vmul.f32 %v85, %v89
  %v94 = vmul.f32 %v86, %v90
  %v95 = vsub.f32 %v91, %v93
  %v96 = vsub.f32 %v92, %v94
  %v97 = vand.u32 2147483647, %v85
  %v98 = vand.u32 2147483647, %v86
  %v99 = vsub.f32 0.0, %v97
  %v100 = vsub.f32 0.0, %v98
  %v101 = vmul.f32 %v99, 1.442695
  %v102 = vpow.pop %v101
  %v103 = vmul.f32 %v100, 1.442695
  %v104 = vpow.pop %v103
  %v105 = vadd.f32 %v102, 1.0
  %v106 = vlog2.pop %v105
  %v107 = vmul.f32 %v106, 0.6931472
  %v108 = vmul.f32 -0.5, %v102
  %v109 = vadd.f32 %v108, 1.0
  %v110 = vmul.f32 %v109, %v102
  %v111 = vand.u32 2147483647, %v102
  %vm112 = vcmp.lt.f32.partialorder %v111, 0.0004427343
  %v113 = vsel %vm112, %v110, %v107
  %v114 = vadd.f32 %v104, 1.0
  %v115 = vlog2.pop %v114
  %v116 = vmul.f32 %v115, 0.6931472
  %v117 = vmul.f32 -0.5, %v104
  %v118 = vadd.f32 %v117, 1.0
  %v119 = vmul.f32 %v118, %v104
  %v120 = vand.u32 2147483647, %v104
  %vm121 = vcmp.lt.f32.partialorder %v120, 0.0004427343
  %v122 = vsel %vm121, %v119, %v116
  %v123 = vadd.f32 %v95, %v113
  %v124 = vadd.f32 %v96, %v122
  %v125 = vmax.f32 %v87, 0.0
  %v126 = vmax.f32 %v88, 0.0
  %v127 = vmul.f32 %v87, %v89
  %v128 = vmul.f32 %v88, %v90
  %v129 = vsub.f32 %v125, %v127
  %v130 = vsub.f32 %v126, %v128
  %v131 = vand.u32 2147483647, %v87
  %v132 = vand.u32 2147483647, %v88
  %v133 = vsub.f32 0.0, %v131
  %v134 = vsub.f32 0.0, %v132
  %v135 = vmul.f32 %v133, 1.442695
  %v136 = vpow.pop %v135
  %v137 = vmul.f32 %v134, 1.442695
  %v138 = vpow.pop %v137
  %v139 = vadd.f32 %v136, 1.0
  %v140 = vlog2.pop %v139
  %v141 = vmul.f32 %v140, 0.6931472
  %v142 = vmul.f32 -0.5, %v136
  %v143 = vadd.f32 %v142, 1.0
  %v144 = vmul.f32 %v143, %v136
  %v145 = vand.u32 2147483647, %v136
  %vm146 = vcmp.lt.f32.partialorder %v145, 0.0004427343
  %v147 = vsel %vm146, %v144, %v141
  %v148 = vadd.f32 %v138, 1.0
  %v149 = vlog2.pop %v148
  %v150 = vmul.f32 %v149, 0.6931472
  %v151 = vmul.f32 -0.5, %v138
  %v152 = vadd.f32 %v151, 1.0
  %v153 = vmul.f32 %v152, %v138
  %v154 = vand.u32 2147483647, %v138
  %vm155 = vcmp.lt.f32.partialorder %v154, 0.0004427343
  %v156 = vsel %vm155, %v153, %v150
  %v157 = vadd.f32 %v129, %v147
  %v158 = vadd.f32 %v130, %v156
  %v159 = vadd.f32 %v123, %v157
  %v160 = vadd.f32 %v124, %v158
  %v161 = vld [vmem:[%s3] sm:$0xff]
  %v162 = vadd.f32 %v159, %v160
  %v163 = vadd.f32 %v161, %v162
  %164 = vst [vmem:[%s3] sm:$0xff] %v163
  // Predicated region
  $region18: #{bce_loss.1} parent=0 // pred_check
    _
  $region19: #{bce_loss.1} parent=0 // pred_check_branch
    %166 = sbr.rel (0) target = $region21
  $region20: #{bce_loss.1} parent=0 // pred_region
    _
  $region21: #{bce_loss.1} parent=0 // pred_fallthru
    _
  // Predicated region
  $region22: #{bce_loss.1} parent=0 // pred_check
    _
  $region23: #{bce_loss.1} parent=0 // pred_check_branch
    %168 = sbr.rel (0) target = $region25
  $region24: #{bce_loss.1} parent=0 // pred_region
    _
  $region25: #{bce_loss.1} parent=0 // pred_fallthru
    _

</llo_original>
